<compile_context>
chip_gen: v5e
topology: v5e:2x2
jax: 0.10.0
libtpu: 0.0.40
codegen_flags: <defaults>
</compile_context>

<pallas_src>
import math

import jax
import jax.numpy as jnp
from jax.experimental import pallas as pl
from jax.experimental.pallas import tpu as pltpu


# ----------------------------- Pallas kernel --------------------------------
def qnetwork_fused_kernel(
    state_ref, action_ref,
    w1s_ref, w1a_ref, b1_ref,
    w2_ref, b2_ref,
    w3_ref, b3_ref,
    q_ref,
):
    cd = w1s_ref.dtype            # MXU feed dtype (bf16 or f32); accumulation is f32.
    Hp = w2_ref.shape[1]          # per-head padded hidden dim (multiple of 128)

    s = state_ref[...].astype(cd)
    a = action_ref[...].astype(cd)

    # Layer 1 (both heads fused along lanes): [TB, 2*Hp]
    h = (jnp.dot(s, w1s_ref[...], preferred_element_type=jnp.float32)
         + jnp.dot(a, w1a_ref[...], preferred_element_type=jnp.float32)
         + b1_ref[...])
    h = jnp.maximum(h, 0.0)

    # Layer 2: per-head dense [Hp, Hp] matmuls (no zero block-diagonal).
    # The head split is a lane slice at a 128-multiple boundary -> free.
    h1 = h[:, :Hp].astype(cd)
    h2 = h[:, Hp:].astype(cd)
    g1 = jnp.maximum(
        jnp.dot(h1, w2_ref[0], preferred_element_type=jnp.float32) + b2_ref[0], 0.0)
    g2 = jnp.maximum(
        jnp.dot(h2, w2_ref[1], preferred_element_type=jnp.float32) + b2_ref[1], 0.0)

    # Layer 3: lane-dense [TB, 128] output; col 0 = q1, col 1 = q2, rest zeros.
    q = (jnp.dot(g1.astype(cd), w3_ref[0], preferred_element_type=jnp.float32)
         + jnp.dot(g2.astype(cd), w3_ref[1], preferred_element_type=jnp.float32)
         + b3_ref[...])
    q_ref[...] = q.astype(q_ref.dtype)


# -------------------------- fused-XLA fallback --------------------------------
def _qnetwork_forward_xla(state, action, packed):
    """Small-batch path: same math as the kernel, plain XLA (no pallas_call overhead)."""
    cd = packed["w1s"].dtype
    Hp = packed["w2"].shape[1]
    h = (jnp.dot(state.astype(cd), packed["w1s"], preferred_element_type=jnp.float32)
         + jnp.dot(action.astype(cd), packed["w1a"], preferred_element_type=jnp.float32)
         + packed["b1"])
    h = jnp.maximum(h, 0.0)
    h1 = h[:, :Hp].astype(cd)
    h2 = h[:, Hp:].astype(cd)
    g1 = jnp.maximum(
        jnp.dot(h1, packed["w2"][0], preferred_element_type=jnp.float32) + packed["b2"][0], 0.0)
    g2 = jnp.maximum(
        jnp.dot(h2, packed["w2"][1], preferred_element_type=jnp.float32) + packed["b2"][1], 0.0)
    q = (jnp.dot(g1.astype(cd), packed["w3"][0], preferred_element_type=jnp.float32)
         + jnp.dot(g2.astype(cd), packed["w3"][1], preferred_element_type=jnp.float32)
         + packed["b3"])
    return q[:, 0:1], q[:, 1:2]


# ------------------------------ wrapper --------------------------------------
def qnetwork_forward(state, action, packed, *, use_pallas=None):
    """Twin-Q forward from packed (fused) params. Returns (q1, q2), each [B, 1]."""
    B, num_inputs = state.shape
    num_actions = action.shape[1]

    if use_pallas is None:
        use_pallas = B >= 128        # tiny batches: pallas_call fixed cost dominates
    if not use_pallas:
        return _qnetwork_forward_xla(state, action, packed)

    Hp = packed["w2"].shape[1]       # per-head padded hidden dim (multiple of 128)
    OUT = packed["w3"].shape[2]      # lane-dense output width (128)

    # Pad the batch to a sublane multiple so every block is (8,*)-aligned.
    B_pad = ((B + 7) // 8) * 8
    if B_pad != B:
        state = jnp.pad(state, ((0, B_pad - B), (0, 0)))
        action = jnp.pad(action, ((0, B_pad - B), (0, 0)))

    # Batch tile: big enough that MXU work dwarfs the ~0.35us per-grid-step
    # overhead; for large batches keep >=2 grid steps so both v7x TensorCores
    # get work ("parallel" batch axis).
    TB = min(2048, B_pad)
    if B_pad >= 256 and pl.cdiv(B_pad, TB) < 2:
        TB = max(8, ((B_pad // 2 + 7) // 8) * 8)
    grid = (pl.cdiv(B_pad, TB),)

    w1s, w1a = packed["w1s"], packed["w1a"]
    b1, w2, b2, w3, b3 = (packed["b1"], packed["w2"], packed["b2"],
                          packed["w3"], packed["b3"])

    in_specs = [
        pl.BlockSpec((TB, num_inputs), lambda i: (i, 0)),     # state  (batch-tiled)
        pl.BlockSpec((TB, num_actions), lambda i: (i, 0)),    # action (batch-tiled)
        pl.BlockSpec(w1s.shape, lambda i: (0, 0)),            # weights: VMEM-resident
        pl.BlockSpec(w1a.shape, lambda i: (0, 0)),
        pl.BlockSpec(b1.shape, lambda i: (0, 0)),
        pl.BlockSpec(w2.shape, lambda i: (0, 0, 0)),
        pl.BlockSpec(b2.shape, lambda i: (0, 0, 0)),
        pl.BlockSpec(w3.shape, lambda i: (0, 0, 0)),
        pl.BlockSpec(b3.shape, lambda i: (0, 0)),
    ]
    out_specs = pl.BlockSpec((TB, OUT), lambda i: (i, 0))

    # Advisory cost estimate (helps XLA schedule around the custom call).
    flops = (2 * B_pad * (num_inputs + num_actions) * 2 * Hp   # layer 1
             + 2 * (2 * B_pad * Hp * Hp)                        # layer 2 (two heads)
             + 2 * (2 * B_pad * Hp * OUT))                      # layer 3 (two heads)
    weight_bytes = int(sum(int(v.size) * v.dtype.itemsize for v in packed.values()))
    bytes_accessed = int(weight_bytes
                         + (B_pad * (num_inputs + num_actions) + B_pad * OUT) * 4)
    cost = pl.CostEstimate(flops=int(flops), transcendentals=0,
                           bytes_accessed=bytes_accessed)

    # Raise the scoped VMEM limit only when the footprint demands it
    # (double-buffered weights + activation tiles + f32 intermediates).
    cp_kwargs = dict(dimension_semantics=("parallel",))
    act_bytes = TB * (num_inputs + num_actions + OUT) * 4
    interm_bytes = TB * 2 * Hp * 4 * 2
    vmem_need = 2 * (weight_bytes + act_bytes) + interm_bytes
    if vmem_need > 24 * 1024 * 1024:
        cp_kwargs["vmem_limit_bytes"] = int(min(vmem_need + (8 << 20),
                                                64 * 1024 * 1024))

    q = pl.pallas_call(
        qnetwork_fused_kernel,
        out_shape=jax.ShapeDtypeStruct((B_pad, OUT), jnp.float32),
        grid=grid,
        in_specs=in_specs,
        out_specs=out_specs,
        cost_estimate=cost,
        compiler_params=pltpu.CompilerParams(**cp_kwargs),
    )(state, action, w1s, w1a, b1, w2, b2, w3, b3)

    q = q[:B]
    return q[:, 0:1], q[:, 1:2]


# -------------------------- parameter construction ---------------------------
def xavier_uniform(key, fan_in, fan_out):
    """torch.nn.init.xavier_uniform_ with gain=1, stored as [in, out]."""
    limit = math.sqrt(6.0 / (fan_in + fan_out))
    return jax.random.uniform(
        key, (fan_in, fan_out), dtype=jnp.float32, minval=-limit, maxval=limit
    )


def init_qnetwork_params(key, num_inputs, num_actions, hidden_dim):
    """Raw per-layer params, same layout/init as the PyTorch module ([in, out] weights)."""
    d = num_inputs + num_actions
    keys = jax.random.split(key, 6)
    return {
        "w1": xavier_uniform(keys[0], d, hidden_dim),
        "b1": jnp.zeros((1, hidden_dim), jnp.float32),
        "w2": xavier_uniform(keys[1], hidden_dim, hidden_dim),
        "b2": jnp.zeros((1, hidden_dim), jnp.float32),
        "w3": xavier_uniform(keys[2], hidden_dim, 1),
        "b3": jnp.zeros((1, 1), jnp.float32),
        "w4": xavier_uniform(keys[3], d, hidden_dim),
        "b4": jnp.zeros((1, hidden_dim), jnp.float32),
        "w5": xavier_uniform(keys[4], hidden_dim, hidden_dim),
        "b5": jnp.zeros((1, hidden_dim), jnp.float32),
        "w6": xavier_uniform(keys[5], hidden_dim, 1),
        "b6": jnp.zeros((1, 1), jnp.float32),
    }


def pack_qnetwork_params(p, num_inputs, dtype=jnp.bfloat16):
    """Fuse the twin heads (done once, outside the hot path).

    Weights are cast to `dtype` (bf16 by default: full-rate MXU feed, half the
    DMA/VMEM); biases stay f32 so bias-add/ReLU run f32 on every generation.
    Each head's hidden dim is zero-padded to a multiple of 128 so the in-kernel
    head split lands on a vreg boundary.  Layer-3 weights/bias are zero-padded
    to 128 output lanes (col 0 = q1, col 1 = q2) for unmasked lane-dense stores.
    """
    H = p["w1"].shape[1]
    Hp = ((H + 127) // 128) * 128
    OUT = 128

    def pad_cols(w):
        return jnp.pad(w, ((0, 0), (0, Hp - w.shape[1])))

    def pad_sq(w):
        return jnp.pad(w, ((0, Hp - w.shape[0]), (0, Hp - w.shape[1])))

    # Layer 1: split rows per input (state / action), heads stacked along lanes.
    w1, w4 = p["w1"], p["w4"]
    w1s = jnp.concatenate([pad_cols(w1[:num_inputs]), pad_cols(w4[:num_inputs])], axis=1)
    w1a = jnp.concatenate([pad_cols(w1[num_inputs:]), pad_cols(w4[num_inputs:])], axis=1)
    b1 = jnp.concatenate([pad_cols(p["b1"]), pad_cols(p["b4"])], axis=1)          # [1, 2Hp]

    # Layer 2: per-head dense matrices stacked -> [2, Hp, Hp] (no zero block-diag).
    w2 = jnp.stack([pad_sq(p["w2"]), pad_sq(p["w5"])])                            # [2, Hp, Hp]
    b2 = jnp.stack([pad_cols(p["b2"]), pad_cols(p["b5"])])                        # [2, 1, Hp]

    # Layer 3: per-head [Hp, 128] lane-dense; padding columns are exact zeros.
    w3a = jnp.zeros((Hp, OUT), jnp.float32).at[:H, 0].set(p["w3"][:, 0])
    w3b = jnp.zeros((Hp, OUT), jnp.float32).at[:H, 1].set(p["w6"][:, 0])
    w3 = jnp.stack([w3a, w3b])                                                    # [2, Hp, 128]
    b3 = (jnp.zeros((1, OUT), jnp.float32)
          .at[0, 0].set(p["b3"][0, 0])
          .at[0, 1].set(p["b6"][0, 0]))                                           # [1, 128]

    return {
        "w1s": w1s.astype(dtype),
        "w1a": w1a.astype(dtype),
        "b1": b1,
        "w2": w2.astype(dtype),
        "b2": b2,
        "w3": w3.astype(dtype),
        "b3": b3,
    }


# ------------------------- pure-JAX reference --------------------------------
def qnetwork_ref(state, action, p):
    xu = jnp.concatenate([state, action], axis=1)
    h = jnp.maximum(xu @ p["w1"] + p["b1"], 0.0)
    h = jnp.maximum(h @ p["w2"] + p["b2"], 0.0)
    q1 = h @ p["w3"] + p["b3"]
    g = jnp.maximum(xu @ p["w4"] + p["b4"], 0.0)
    g = jnp.maximum(g @ p["w5"] + p["b5"], 0.0)
    q2 = g @ p["w6"] + p["b6"]
    return q1, q2


# ------------------------------- main -----------------------------------------
if __name__ == "__main__":
    num_inputs, num_actions, hidden_dim = 8, 4, 32

    key = jax.random.PRNGKey(0)
    k_s, k_a, k_p, k_s2, k_a2 = jax.random.split(key, 5)
    params = init_qnetwork_params(k_p, num_inputs, num_actions, hidden_dim)

    # --- small-batch correctness check: f32 MXU feed, forced Pallas path ------
    B = 2
    state = jax.random.normal(k_s, (B, num_inputs), dtype=jnp.float32)
    action = jax.random.normal(k_a, (B, num_actions), dtype=jnp.float32)
    packed_f32 = pack_qnetwork_params(params, num_inputs, dtype=jnp.float32)

    q1, q2 = qnetwork_forward(state, action, packed_f32, use_pallas=True)
    q1 = jax.block_until_ready(q1)
    q2 = jax.block_until_ready(q2)

    r1, r2 = qnetwork_ref(state, action, params)
    assert q1.shape == (B, 1) and q2.shape == (B, 1)
    assert jnp.allclose(q1, r1, atol=1e-4), (q1, r1)
    assert jnp.allclose(q2, r2, atol=1e-4), (q2, r2)

    # Auto-dispatch at tiny B goes through the fused-XLA fallback; same result.
    f1, f2 = qnetwork_forward(state, action, packed_f32)
    assert jnp.allclose(f1, r1, atol=1e-4) and jnp.allclose(f2, r2, atol=1e-4)

    # --- training-path check: bf16 MXU feed (default packing), multi-step grid --
    B2 = 256
    state2 = jax.random.normal(k_s2, (B2, num_inputs), dtype=jnp.float32)
    action2 = jax.random.normal(k_a2, (B2, num_actions), dtype=jnp.float32)
    packed_bf16 = pack_qnetwork_params(params, num_inputs)          # bf16 default
    t1, t2 = qnetwork_forward(state2, action2, packed_bf16)         # Pallas, grid >= 2
    t1 = jax.block_until_ready(t1)
    t2 = jax.block_until_ready(t2)
    s1, s2 = qnetwork_ref(state2, action2, params)
    assert jnp.allclose(t1, s1, atol=1e-1), "bf16 twin-Q head 1 mismatch"
    assert jnp.allclose(t2, s2, atol=1e-1), "bf16 twin-Q head 2 mismatch"

    print("KERNEL_OK")
</pallas_src>

<mosaic_0001>
module attributes {stable_mosaic.version = 11 : i64} {
  func.func @qnetwork_fused_kernel(%arg0: i32, %arg1: memref<8x8xf32, #tpu.memory_space<vmem>>, %arg2: memref<8x4xf32, #tpu.memory_space<vmem>>, %arg3: memref<8x256xf32, #tpu.memory_space<vmem>>, %arg4: memref<4x256xf32, #tpu.memory_space<vmem>>, %arg5: memref<1x256xf32, #tpu.memory_space<vmem>>, %arg6: memref<2x128x128xf32, #tpu.memory_space<vmem>>, %arg7: memref<2x1x128xf32, #tpu.memory_space<vmem>>, %arg8: memref<2x128x128xf32, #tpu.memory_space<vmem>>, %arg9: memref<1x128xf32, #tpu.memory_space<vmem>>, %arg10: memref<8x128xf32, #tpu.memory_space<vmem>>) attributes {dimension_semantics = [#tpu.dimension_semantics<parallel>], iteration_bounds = array<i64: 1>, scalar_prefetch = 0 : i64, scratch_operands = 0 : i64, tpu.core_type = #tpu.core_type<tc>, window_params = [{transform_indices = @transform_0, window_bounds = array<i64: 8, 8>}, {transform_indices = @transform_1, window_bounds = array<i64: 8, 4>}, {pipeline_mode = #tpu.pipeline_mode<synchronous>, transform_indices = @transform_2, window_bounds = array<i64: 8, 256>}, {pipeline_mode = #tpu.pipeline_mode<synchronous>, transform_indices = @transform_3, window_bounds = array<i64: 4, 256>}, {pipeline_mode = #tpu.pipeline_mode<synchronous>, transform_indices = @transform_4, window_bounds = array<i64: 1, 256>}, {pipeline_mode = #tpu.pipeline_mode<synchronous>, transform_indices = @transform_5, window_bounds = array<i64: 2, 128, 128>}, {pipeline_mode = #tpu.pipeline_mode<synchronous>, transform_indices = @transform_6, window_bounds = array<i64: 2, 1, 128>}, {pipeline_mode = #tpu.pipeline_mode<synchronous>, transform_indices = @transform_7, window_bounds = array<i64: 2, 128, 128>}, {pipeline_mode = #tpu.pipeline_mode<synchronous>, transform_indices = @transform_8, window_bounds = array<i64: 1, 128>}, {transform_indices = @transform_9, window_bounds = array<i64: 8, 128>}]} {
    %c0 = arith.constant 0 : index
    %c0_0 = arith.constant 0 : index
    %0 = vector.load %arg1[%c0, %c0_0] : memref<8x8xf32, #tpu.memory_space<vmem>>, vector<8x8xf32>
    %c0_1 = arith.constant 0 : index
    %c0_2 = arith.constant 0 : index
    %1 = vector.load %arg2[%c0_1, %c0_2] : memref<8x4xf32, #tpu.memory_space<vmem>>, vector<8x4xf32>
    %c0_3 = arith.constant 0 : index
    %c0_4 = arith.constant 0 : index
    %2 = vector.load %arg3[%c0_3, %c0_4] : memref<8x256xf32, #tpu.memory_space<vmem>>, vector<8x256xf32>
    %cst = arith.constant dense<0.000000e+00> : vector<8x256xf32>
    %3 = tpu.matmul %0, %2, %cst {dimension_numbers = #tpu.dot_dimension_numbers<[1], [0], [0], [1], [0, 0, 1, 1], [], []>} : vector<8x8xf32>, vector<8x256xf32>, vector<8x256xf32> -> vector<8x256xf32>
    %c0_5 = arith.constant 0 : index
    %c0_6 = arith.constant 0 : index
    %4 = vector.load %arg4[%c0_5, %c0_6] : memref<4x256xf32, #tpu.memory_space<vmem>>, vector<4x256xf32>
    %cst_7 = arith.constant dense<0.000000e+00> : vector<8x256xf32>
    %5 = tpu.matmul %1, %4, %cst_7 {dimension_numbers = #tpu.dot_dimension_numbers<[1], [0], [0], [1], [0, 0, 1, 1], [], []>} : vector<8x4xf32>, vector<4x256xf32>, vector<8x256xf32> -> vector<8x256xf32>
    %6 = arith.addf %3, %5 : vector<8x256xf32>
    %c0_8 = arith.constant 0 : index
    %c0_9 = arith.constant 0 : index
    %7 = vector.load %arg5[%c0_8, %c0_9] : memref<1x256xf32, #tpu.memory_space<vmem>>, vector<1x256xf32>
    %8 = vector.broadcast %7 : vector<1x256xf32> to vector<8x256xf32>
    %9 = arith.addf %6, %8 : vector<8x256xf32>
    %cst_10 = arith.constant 0.000000e+00 : f32
    %10 = vector.broadcast %cst_10 : f32 to vector<8x256xf32>
    %11 = arith.maximumf %9, %10 : vector<8x256xf32>
    %12 = vector.extract_strided_slice %11 {offsets = [0, 0], sizes = [8, 128], strides = [1, 1]} : vector<8x256xf32> to vector<8x128xf32>
    %13 = vector.extract_strided_slice %11 {offsets = [0, 128], sizes = [8, 128], strides = [1, 1]} : vector<8x256xf32> to vector<8x128xf32>
    %c0_11 = arith.constant 0 : index
    %c0_12 = arith.constant 0 : index
    %c0_13 = arith.constant 0 : index
    %14 = vector.load %arg6[%c0_11, %c0_12, %c0_13] : memref<2x128x128xf32, #tpu.memory_space<vmem>>, vector<1x128x128xf32>
    %15 = vector.shape_cast %14 : vector<1x128x128xf32> to vector<128x128xf32>
    %cst_14 = arith.constant dense<0.000000e+00> : vector<8x128xf32>
    %16 = tpu.matmul %12, %15, %cst_14 {dimension_numbers = #tpu.dot_dimension_numbers<[1], [0], [0], [1], [0, 0, 1, 1], [], []>} : vector<8x128xf32>, vector<128x128xf32>, vector<8x128xf32> -> vector<8x128xf32>
    %c0_15 = arith.constant 0 : index
    %c0_16 = arith.constant 0 : index
    %c0_17 = arith.constant 0 : index
    %17 = vector.load %arg7[%c0_15, %c0_16, %c0_17] : memref<2x1x128xf32, #tpu.memory_space<vmem>>, vector<1x1x128xf32>
    %18 = vector.shape_cast %17 : vector<1x1x128xf32> to vector<1x128xf32>
    %19 = vector.broadcast %18 : vector<1x128xf32> to vector<8x128xf32>
    %20 = arith.addf %16, %19 : vector<8x128xf32>
    %cst_18 = arith.constant 0.000000e+00 : f32
    %21 = vector.broadcast %cst_18 : f32 to vector<8x128xf32>
    %22 = arith.maximumf %20, %21 : vector<8x128xf32>
    %c1 = arith.constant 1 : index
    %c0_19 = arith.constant 0 : index
    %c0_20 = arith.constant 0 : index
    %23 = vector.load %arg6[%c1, %c0_19, %c0_20] : memref<2x128x128xf32, #tpu.memory_space<vmem>>, vector<1x128x128xf32>
    %24 = vector.shape_cast %23 : vector<1x128x128xf32> to vector<128x128xf32>
    %cst_21 = arith.constant dense<0.000000e+00> : vector<8x128xf32>
    %25 = tpu.matmul %13, %24, %cst_21 {dimension_numbers = #tpu.dot_dimension_numbers<[1], [0], [0], [1], [0, 0, 1, 1], [], []>} : vector<8x128xf32>, vector<128x128xf32>, vector<8x128xf32> -> vector<8x128xf32>
    %c1_22 = arith.constant 1 : index
    %c0_23 = arith.constant 0 : index
    %c0_24 = arith.constant 0 : index
    %26 = vector.load %arg7[%c1_22, %c0_23, %c0_24] : memref<2x1x128xf32, #tpu.memory_space<vmem>>, vector<1x1x128xf32>
    %27 = vector.shape_cast %26 : vector<1x1x128xf32> to vector<1x128xf32>
    %28 = vector.broadcast %27 : vector<1x128xf32> to vector<8x128xf32>
    %29 = arith.addf %25, %28 : vector<8x128xf32>
    %cst_25 = arith.constant 0.000000e+00 : f32
    %30 = vector.broadcast %cst_25 : f32 to vector<8x128xf32>
    %31 = arith.maximumf %29, %30 : vector<8x128xf32>
    %c0_26 = arith.constant 0 : index
    %c0_27 = arith.constant 0 : index
    %c0_28 = arith.constant 0 : index
    %32 = vector.load %arg8[%c0_26, %c0_27, %c0_28] : memref<2x128x128xf32, #tpu.memory_space<vmem>>, vector<1x128x128xf32>
    %33 = vector.shape_cast %32 : vector<1x128x128xf32> to vector<128x128xf32>
    %cst_29 = arith.constant dense<0.000000e+00> : vector<8x128xf32>
    %34 = tpu.matmul %22, %33, %cst_29 {dimension_numbers = #tpu.dot_dimension_numbers<[1], [0], [0], [1], [0, 0, 1, 1], [], []>} : vector<8x128xf32>, vector<128x128xf32>, vector<8x128xf32> -> vector<8x128xf32>
    %c1_30 = arith.constant 1 : index
    %c0_31 = arith.constant 0 : index
    %c0_32 = arith.constant 0 : index
    %35 = vector.load %arg8[%c1_30, %c0_31, %c0_32] : memref<2x128x128xf32, #tpu.memory_space<vmem>>, vector<1x128x128xf32>
    %36 = vector.shape_cast %35 : vector<1x128x128xf32> to vector<128x128xf32>
    %cst_33 = arith.constant dense<0.000000e+00> : vector<8x128xf32>
    %37 = tpu.matmul %31, %36, %cst_33 {dimension_numbers = #tpu.dot_dimension_numbers<[1], [0], [0], [1], [0, 0, 1, 1], [], []>} : vector<8x128xf32>, vector<128x128xf32>, vector<8x128xf32> -> vector<8x128xf32>
    %38 = arith.addf %34, %37 : vector<8x128xf32>
    %c0_34 = arith.constant 0 : index
    %c0_35 = arith.constant 0 : index
    %39 = vector.load %arg9[%c0_34, %c0_35] : memref<1x128xf32, #tpu.memory_space<vmem>>, vector<1x128xf32>
    %40 = vector.broadcast %39 : vector<1x128xf32> to vector<8x128xf32>
    %41 = arith.addf %38, %40 : vector<8x128xf32>
    %c0_36 = arith.constant 0 : index
    %c0_37 = arith.constant 0 : index
    %42 = vector.load %arg10[%c0_36, %c0_37] : memref<8x128xf32, #tpu.memory_space<vmem>>, vector<8x128xf32>
    tpu.vector_store %arg10[%c0_36, %c0_37], %41 {strides = array<i32>} : memref<8x128xf32, #tpu.memory_space<vmem>>, vector<8x128xf32>,
    return
  }
  func.func @transform_0(%arg0: i32) -> (i32, i32) {
    %c0_i32 = arith.constant 0 : i32
    %c0_i32_0 = arith.constant 0 : i32
    return %arg0, %c0_i32 : i32, i32
  }
  func.func @transform_1(%arg0: i32) -> (i32, i32) {
    %c0_i32 = arith.constant 0 : i32
    %c0_i32_0 = arith.constant 0 : i32
    return %arg0, %c0_i32 : i32, i32
  }
  func.func @transform_2(%arg0: i32) -> (i32, i32) {
    %c0_i32 = arith.constant 0 : i32
    %c0_i32_0 = arith.constant 0 : i32
    %c0_i32_1 = arith.constant 0 : i32
    return %c0_i32, %c0_i32_0 : i32, i32
  }
  func.func @transform_3(%arg0: i32) -> (i32, i32) {
    %c0_i32 = arith.constant 0 : i32
    %c0_i32_0 = arith.constant 0 : i32
    %c0_i32_1 = arith.constant 0 : i32
    return %c0_i32, %c0_i32_0 : i32, i32
  }
  func.func @transform_4(%arg0: i32) -> (i32, i32) {
    %c0_i32 = arith.constant 0 : i32
    %c0_i32_0 = arith.constant 0 : i32
    %c0_i32_1 = arith.constant 0 : i32
    return %c0_i32, %c0_i32_0 : i32, i32
  }
  func.func @transform_5(%arg0: i32) -> (i32, i32, i32) {
    %c0_i32 = arith.constant 0 : i32
    %c0_i32_0 = arith.constant 0 : i32
    %c0_i32_1 = arith.constant 0 : i32
    %c0_i32_2 = arith.constant 0 : i32
    return %c0_i32, %c0_i32_0, %c0_i32_1 : i32, i32, i32
  }
  func.func @transform_6(%arg0: i32) -> (i32, i32, i32) {
    %c0_i32 = arith.constant 0 : i32
    %c0_i32_0 = arith.constant 0 : i32
    %c0_i32_1 = arith.constant 0 : i32
    %c0_i32_2 = arith.constant 0 : i32
    return %c0_i32, %c0_i32_0, %c0_i32_1 : i32, i32, i32
  }
  func.func @transform_7(%arg0: i32) -> (i32, i32, i32) {
    %c0_i32 = arith.constant 0 : i32
    %c0_i32_0 = arith.constant 0 : i32
    %c0_i32_1 = arith.constant 0 : i32
    %c0_i32_2 = arith.constant 0 : i32
    return %c0_i32, %c0_i32_0, %c0_i32_1 : i32, i32, i32
  }
  func.func @transform_8(%arg0: i32) -> (i32, i32) {
    %c0_i32 = arith.constant 0 : i32
    %c0_i32_0 = arith.constant 0 : i32
    %c0_i32_1 = arith.constant 0 : i32
    return %c0_i32, %c0_i32_0 : i32, i32
  }
  func.func @transform_9(%arg0: i32) -> (i32, i32) {
    %c0_i32 = arith.constant 0 : i32
    %c0_i32_0 = arith.constant 0 : i32
    return %arg0, %c0_i32 : i32, i32
  }
}

</mosaic_0001>

<llo_original>
// kernel: tpu_custom_call.1
$region0: #{tpu_custom_call.1}
  #allocation0 [shape = 'u32[]', space=smem, size = 0x4, offset = 0x4, fixed_abs, tag = 'smem constant byte address 0x4 - core index']
  #allocation1 [shape = 'u32[72,128]{1,0:T(1,128)}', space=vmem, size = 0x9000, scoped, tag = 'internal scratch']
  %s0 = inlined_call_operand.vmem [shape: f32[8,8], index: 0, kind: input, shape index: {}]
  %s1 = inlined_call_operand.vmem [shape: f32[8,4], index: 1, kind: input, shape index: {}]
  %s2 = inlined_call_operand.hbm [shape: f32[8,256], index: 2, kind: input, shape index: {}]
  %s3 = inlined_call_operand.hbm [shape: f32[4,256], index: 3, kind: input, shape index: {}]
  %s4 = inlined_call_operand.vmem [shape: f32[1,256], index: 4, kind: input, shape index: {}]
  %s5 = inlined_call_operand.hbm [shape: f32[2,128,128], index: 5, kind: input, shape index: {}]
  %s6 = inlined_call_operand.vmem [shape: f32[2,1,128], index: 6, kind: input, shape index: {}]
  %s7 = inlined_call_operand.hbm [shape: f32[2,128,128], index: 7, kind: input, shape index: {}]
  %s8 = inlined_call_operand.vmem [shape: f32[1,128], index: 8, kind: input, shape index: {}]
  %s9 = inlined_call_operand.hbm [shape: f32[8,128], index: 9, kind: output, shape index: {}]
  %s10 = sld [smem:[#allocation0]]
  $region62: #{tpu_custom_call.1} parent=0
    _
  %s12 = ssub.s32 1, %s10
  %s13 = scalar_select 0, %s12, %s10
  $region1: #{tpu_custom_call.1} parent=0
    #allocation2 [shape = 'u8[8192]{0}', space=vmem, size = 0x2000, scoped, tag = 'input window, operand 2, single buffered']
    #allocation3 [shape = 's32[1]{0}', space=sflag, size = 0x4, scoped, tag = 'scoped memory for tpu_custom_call.1']
    #allocation4 [shape = 's32[1]{0}', space=sflag, size = 0x4, scoped, tag = 'scoped memory for tpu_custom_call.1']
    #allocation5 [shape = 'u8[4096]{0}', space=vmem, size = 0x1000, scoped, tag = 'input window, operand 3, single buffered']
    #allocation6 [shape = 's32[1]{0}', space=sflag, size = 0x4, scoped, tag = 'scoped memory for tpu_custom_call.1']
    #allocation7 [shape = 'u8[131072]{0}', space=vmem, size = 0x20000, scoped, tag = 'input window, operand 5, single buffered']
    #allocation8 [shape = 'u8[131072]{0}', space=vmem, size = 0x20000, scoped, tag = 'input window, operand 7, single buffered']
    #allocation9 [shape = 's32[1]{0}', space=sflag, size = 0x4, scoped, tag = 'scoped memory for tpu_custom_call.1']
    #allocation10 [shape = 'u8[4096]{0}', space=vmem, size = 0x1000, scoped, tag = 'output window, operand 0, single buffered']
    %14 = vsyncpa [#allocation3], 0
    %15 = vsyncpa [#allocation6], 0
    %16 = vsyncpa [#allocation9], 0
    %17 = vsyncpa [#allocation4], 0
    // Predicated region
    $region2: #{tpu_custom_call.1} parent=1 // pred_check
      _
    $region3: #{tpu_custom_call.1} parent=1 // pred_check_branch
      %19 = sbr.rel (0) target = $region5
    $region4: #{tpu_custom_call.1} parent=1 // pred_region
      _
    $region5: #{tpu_custom_call.1} parent=1 // pred_fallthru
      _
    // Predicated region
    $region6: #{tpu_custom_call.1} parent=1 // pred_check
      _
    $region7: #{tpu_custom_call.1} parent=1 // pred_check_branch
      %21 = sbr.rel (0) target = $region9
    $region8: #{tpu_custom_call.1} parent=1 // pred_region
      _
    $region9: #{tpu_custom_call.1} parent=1 // pred_fallthru
      _
    // Predicated region
    $region10: #{tpu_custom_call.1} parent=1 // pred_check
      _
    $region11: #{tpu_custom_call.1} parent=1 // pred_check_branch
      %23 = sbr.rel (0) target = $region13
    $region12: #{tpu_custom_call.1} parent=1 // pred_region
      %25 = vsyncadd [#allocation3], 0
      %s27 = sshll.u32 %s2, 4
      %s28 = int_to_ptr.hbm [resolvable:$true] %s27
      %s29 = sshll.u32 [#allocation2], 4
      %s30 = int_to_ptr.vmem [resolvable:$true] %s29
      %32 = dma.hbm_to_vmem [thread:$0]  %s28, 256, %s30, [#allocation3]
    $region13: #{tpu_custom_call.1} parent=1 // pred_fallthru
      _
    // Predicated region
    $region14: #{tpu_custom_call.1} parent=1 // pred_check
      _
    $region15: #{tpu_custom_call.1} parent=1 // pred_check_branch
      %34 = sbr.rel (0) target = $region17
    $region16: #{tpu_custom_call.1} parent=1 // pred_region
      %36 = vsyncadd [#allocation6], 0
      %s38 = sshll.u32 %s3, 4
      %s39 = int_to_ptr.hbm [resolvable:$true] %s38
      %s40 = sshll.u32 [#allocation5], 4
      %s41 = int_to_ptr.vmem [resolvable:$true] %s40
      %43 = dma.hbm_to_vmem [thread:$0]  %s39, 128, %s41, [#allocation6]
    $region17: #{tpu_custom_call.1} parent=1 // pred_fallthru
      _
    // Predicated region
    $region18: #{tpu_custom_call.1} parent=1 // pred_check
      _
    $region19: #{tpu_custom_call.1} parent=1 // pred_check_branch
      %45 = sbr.rel (0) target = $region21
    $region20: #{tpu_custom_call.1} parent=1 // pred_region
      _
    $region21: #{tpu_custom_call.1} parent=1 // pred_fallthru
      _
    // Predicated region
    $region22: #{tpu_custom_call.1} parent=1 // pred_check
      _
    $region23: #{tpu_custom_call.1} parent=1 // pred_check_branch
      %47 = sbr.rel (0) target = $region25
    $region24: #{tpu_custom_call.1} parent=1 // pred_region
      %49 = vsyncadd [#allocation6], 0
      %s50 = sshll.u32 %s5, 4
      %s51 = int_to_ptr.hbm [resolvable:$true] %s50
      %s52 = sshll.u32 [#allocation7], 4
      %s53 = int_to_ptr.vmem [resolvable:$true] %s52
      %58 = dma.hbm_to_vmem [thread:$0]  %s51, 4096, %s53, [#allocation6], 128, 128, 8
    $region25: #{tpu_custom_call.1} parent=1 // pred_fallthru
      _
    // Predicated region
    $region26: #{tpu_custom_call.1} parent=1 // pred_check
      _
    $region27: #{tpu_custom_call.1} parent=1 // pred_check_branch
      %60 = sbr.rel (0) target = $region29
    $region28: #{tpu_custom_call.1} parent=1 // pred_region
      _
    $region29: #{tpu_custom_call.1} parent=1 // pred_fallthru
      _
    // Predicated region
    $region30: #{tpu_custom_call.1} parent=1 // pred_check
      _
    $region31: #{tpu_custom_call.1} parent=1 // pred_check_branch
      %62 = sbr.rel (0) target = $region33
    $region32: #{tpu_custom_call.1} parent=1 // pred_region
      %64 = vsyncadd [#allocation9], 0
      %s65 = sshll.u32 %s7, 4
      %s66 = int_to_ptr.hbm [resolvable:$true] %s65
      %s67 = sshll.u32 [#allocation8], 4
      %s68 = int_to_ptr.vmem [resolvable:$true] %s67
      %73 = dma.hbm_to_vmem [thread:$0]  %s66, 4096, %s68, [#allocation9], 128, 128, 8
    $region33: #{tpu_custom_call.1} parent=1 // pred_fallthru
      _
    // Predicated region
    $region34: #{tpu_custom_call.1} parent=1 // pred_check
      _
    $region35: #{tpu_custom_call.1} parent=1 // pred_check_branch
      %75 = sbr.rel (0) target = $region37
    $region36: #{tpu_custom_call.1} parent=1 // pred_region
      _
    $region37: #{tpu_custom_call.1} parent=1 // pred_fallthru
      _
    // Predicated region
    $region38: #{tpu_custom_call.1} parent=1 // pred_check
      _
    $region39: #{tpu_custom_call.1} parent=1 // pred_check_branch
      %77 = sbr.rel (0) target = $region41
    $region40: #{tpu_custom_call.1} parent=1 // pred_region
      %79 = dma.done [#allocation3], 256
    $region41: #{tpu_custom_call.1} parent=1 // pred_fallthru
      _
    // Predicated region
    $region42: #{tpu_custom_call.1} parent=1 // pred_check
      _
    $region43: #{tpu_custom_call.1} parent=1 // pred_check_branch
      %81 = sbr.rel (0) target = $region45
    $region44: #{tpu_custom_call.1} parent=1 // pred_region
      %83 = dma.done [#allocation6], 128
    $region45: #{tpu_custom_call.1} parent=1 // pred_fallthru
      _
    // Predicated region
    $region46: #{tpu_custom_call.1} parent=1 // pred_check
      _
    $region47: #{tpu_custom_call.1} parent=1 // pred_check_branch
      %85 = sbr.rel (0) target = $region49
    $region48: #{tpu_custom_call.1} parent=1 // pred_region
      %87 = dma.done [#allocation6], 4096
    $region49: #{tpu_custom_call.1} parent=1 // pred_fallthru
      _
    // Predicated region
    $region50: #{tpu_custom_call.1} parent=1 // pred_check
      _
    $region51: #{tpu_custom_call.1} parent=1 // pred_check_branch
      %89 = sbr.rel (0) target = $region53
    $region52: #{tpu_custom_call.1} parent=1 // pred_region
      %91 = dma.done [#allocation9], 4096
    $region53: #{tpu_custom_call.1} parent=1 // pred_fallthru
      _
    %v92 = vld [vmem:[%s0] sm:$0xff]
    %v93 = vld [vmem:[%s1] sm:$0xff]
    %v94 = vld [vmem:[#allocation2] sm:$0xff]
    %v95 = vld [vmem:[#allocation2 + $0x8] sm:$0xff]
    %v96 = vld [vmem:[#allocation5] sm:$0xff]
    %98 = vst [vmem:[#allocation1] ss:$2 sm:$0xff] %v96
    %v99 = vld.sshfl [vmem:[#allocation1] sm:$0xff pattern:$0x75316420]
    %v100 = vld.sshfl [vmem:[#allocation1 + $0x8] sm:$0xff pattern:$0x75316420]
    %vm101 = vcmask 31744
    %v103 = vsel %vm101, %v93, 0
    %vm105 = vcmask 1043456
    %v106 = vsel %vm105, %v99, 0
    %v108 = vsel %vm105, %v100, 0
    %110 = vmatpush.msra.mxu0 0.0
    %111 = vmatpush.msra.mxu0 0.0
    %112 = vmatpush.msra.mxu0 0.0
    %113 = vmatpush.msra.mxu0 0.0
    %114 = vmatpush.msra.mxu0 0.0
    %115 = vmatpush.msra.mxu0 0.0
    %116 = vmatpush.msra.mxu0 0.0
    %117 = vmatpush.msra.mxu0 0.0
    %118 = vmatpush.msra.mxu0 0.0
    %119 = vmatpush.msra.mxu0 0.0
    %120 = vmatpush.msra.mxu0 0.0
    %121 = vmatpush.msra.mxu0 0.0
    %122 = vmatpush.msra.mxu0 0.0
    %123 = vmatpush.msra.mxu0 0.0
    %124 = vmatpush.msra.mxu0 0.0
    %125 = vmatpush.msra.mxu0 %v106
    %126 = vmatmul.f32.gmra.mxu0 %v103
    %v127 = vpop.f32.mrf.mxu0
    %v128 = vadd.f32 0.0, %v127
    %129 = vdwg.mxu0
    %130 = vmatpush.msra.mxu0 0.0
    %131 = vmatpush.msra.mxu0 0.0
    %132 = vmatpush.msra.mxu0 0.0
    %133 = vmatpush.msra.mxu0 0.0
    %134 = vmatpush.msra.mxu0 0.0
    %135 = vmatpush.msra.mxu0 0.0
    %136 = vmatpush.msra.mxu0 0.0
    %137 = vmatpush.msra.mxu0 0.0
    %138 = vmatpush.msra.mxu0 0.0
    %139 = vmatpush.msra.mxu0 0.0
    %140 = vmatpush.msra.mxu0 0.0
    %141 = vmatpush.msra.mxu0 0.0
    %142 = vmatpush.msra.mxu0 0.0
    %143 = vmatpush.msra.mxu0 0.0
    %144 = vmatpush.msra.mxu0 0.0
    %145 = vmatpush.msra.mxu0 %v108
    %146 = vmatmul.f32.gmra.mxu0 %v103
    %v147 = vpop.f32.mrf.mxu0
    %v148 = vadd.f32 0.0, %v147
    %149 = vdwg.mxu0
    %vm150 = vcmask 64512
    %v152 = vsel %vm150, %v92, 0
    %154 = vmatpush.msra.mxu0 0.0
    %155 = vmatpush.msra.mxu0 0.0
    %156 = vmatpush.msra.mxu0 0.0
    %157 = vmatpush.msra.mxu0 0.0
    %158 = vmatpush.msra.mxu0 0.0
    %159 = vmatpush.msra.mxu0 0.0
    %160 = vmatpush.msra.mxu0 0.0
    %161 = vmatpush.msra.mxu0 0.0
    %162 = vmatpush.msra.mxu0 0.0
    %163 = vmatpush.msra.mxu0 0.0
    %164 = vmatpush.msra.mxu0 0.0
    %165 = vmatpush.msra.mxu0 0.0
    %166 = vmatpush.msra.mxu0 0.0
    %167 = vmatpush.msra.mxu0 0.0
    %168 = vmatpush.msra.mxu0 0.0
    %169 = vmatpush.msra.mxu0 %v94
    %170 = vmatmul.f32.gmra.mxu0 %v152
    %v171 = vpop.f32.mrf.mxu0
    %v172 = vadd.f32 %v128, %v171
    %173 = vdwg.mxu0
    %174 = vmatpush.msra.mxu0 0.0
    %175 = vmatpush.msra.mxu0 0.0
    %176 = vmatpush.msra.mxu0 0.0
    %177 = vmatpush.msra.mxu0 0.0
    %178 = vmatpush.msra.mxu0 0.0
    %179 = vmatpush.msra.mxu0 0.0
    %180 = vmatpush.msra.mxu0 0.0
    %181 = vmatpush.msra.mxu0 0.0
    %182 = vmatpush.msra.mxu0 0.0
    %183 = vmatpush.msra.mxu0 0.0
    %184 = vmatpush.msra.mxu0 0.0
    %185 = vmatpush.msra.mxu0 0.0
    %186 = vmatpush.msra.mxu0 0.0
    %187 = vmatpush.msra.mxu0 0.0
    %188 = vmatpush.msra.mxu0 0.0
    %189 = vmatpush.msra.mxu0 %v95
    %190 = vmatmul.f32.gmra.mxu0 %v152
    %v191 = vpop.f32.mrf.mxu0
    %v192 = vadd.f32 %v148, %v191
    %193 = vdwg.mxu0
    %v194 = vld [vmem:[%s4] sm:$0x3]
    %v196 = vperm.slane %v194, 0
    %v197 = vperm.slane %v194, 1
    %v200 = vadd.f32 %v172, %v196
    %v201 = vadd.f32 %v192, %v197
    %v202 = vmax.f32 %v200, 0.0
    %v203 = vmax.f32 %v201, 0.0
    %v204 = vld [vmem:[#allocation7] sm:$0xff]
    %v205 = vld [vmem:[#allocation7 + $0x8] sm:$0xff]
    %v206 = vld [vmem:[#allocation7 + $0x10] sm:$0xff]
    %v207 = vld [vmem:[#allocation7 + $0x18] sm:$0xff]
    %v208 = vld [vmem:[#allocation7 + $0x20] sm:$0xff]
    %v209 = vld [vmem:[#allocation7 + $0x28] sm:$0xff]
    %v210 = vld [vmem:[#allocation7 + $0x30] sm:$0xff]
    %v211 = vld [vmem:[#allocation7 + $0x38] sm:$0xff]
    %v212 = vld [vmem:[#allocation7 + $0x40] sm:$0xff]
    %v213 = vld [vmem:[#allocation7 + $0x48] sm:$0xff]
    %v214 = vld [vmem:[#allocation7 + $0x50] sm:$0xff]
    %v215 = vld [vmem:[#allocation7 + $0x58] sm:$0xff]
    %v216 = vld [vmem:[#allocation7 + $0x60] sm:$0xff]
    %v217 = vld [vmem:[#allocation7 + $0x68] sm:$0xff]
    %v218 = vld [vmem:[#allocation7 + $0x70] sm:$0xff]
    %v219 = vld [vmem:[#allocation7 + $0x78] sm:$0xff]
    %v220 = vld [vmem:[%s6] sm:$0x1]
    %v222 = vperm.slane %v220, 0
    %224 = vmatpush.msra.mxu0 %v219
    %225 = vmatpush.msra.mxu0 %v218
    %226 = vmatpush.msra.mxu0 %v217
    %227 = vmatpush.msra.mxu0 %v216
    %228 = vmatpush.msra.mxu0 %v215
    %229 = vmatpush.msra.mxu0 %v214
    %230 = vmatpush.msra.mxu0 %v213
    %231 = vmatpush.msra.mxu0 %v212
    %232 = vmatpush.msra.mxu0 %v211
    %233 = vmatpush.msra.mxu0 %v210
    %234 = vmatpush.msra.mxu0 %v209
    %235 = vmatpush.msra.mxu0 %v208
    %236 = vmatpush.msra.mxu0 %v207
    %237 = vmatpush.msra.mxu0 %v206
    %238 = vmatpush.msra.mxu0 %v205
    %239 = vmatpush.msra.mxu0 %v204
    %240 = vmatmul.f32.gmra.mxu0 %v202
    %v241 = vpop.f32.mrf.mxu0
    %v242 = vadd.f32 %v222, %v241
    %243 = vdwg.mxu0
    %v244 = vmax.f32 %v242, 0.0
    %s245 = scalar_lea.vmem [#allocation7], 128
    %v246 = vld [vmem:[%s245] sm:$0xff]
    %v247 = vld [vmem:[%s245 + $0x8] sm:$0xff]
    %v248 = vld [vmem:[%s245 + $0x10] sm:$0xff]
    %v249 = vld [vmem:[%s245 + $0x18] sm:$0xff]
    %v250 = vld [vmem:[%s245 + $0x20] sm:$0xff]
    %v251 = vld [vmem:[%s245 + $0x28] sm:$0xff]
    %v252 = vld [vmem:[%s245 + $0x30] sm:$0xff]
    %v253 = vld [vmem:[%s245 + $0x38] sm:$0xff]
    %v254 = vld [vmem:[%s245 + $0x40] sm:$0xff]
    %v255 = vld [vmem:[%s245 + $0x48] sm:$0xff]
    %v256 = vld [vmem:[%s245 + $0x50] sm:$0xff]
    %v257 = vld [vmem:[%s245 + $0x58] sm:$0xff]
    %v258 = vld [vmem:[%s245 + $0x60] sm:$0xff]
    %v259 = vld [vmem:[%s245 + $0x68] sm:$0xff]
    %v260 = vld [vmem:[%s245 + $0x70] sm:$0xff]
    %v261 = vld [vmem:[%s245 + $0x78] sm:$0xff]
    %s262 = scalar_lea.vmem %s6, 1
    %v263 = vld [vmem:[%s262] sm:$0x1]
    %v265 = vperm.slane %v263, 0
    %267 = vmatpush.msra.mxu0 %v261
    %268 = vmatpush.msra.mxu0 %v260
    %269 = vmatpush.msra.mxu0 %v259
    %270 = vmatpush.msra.mxu0 %v258
    %271 = vmatpush.msra.mxu0 %v257
    %272 = vmatpush.msra.mxu0 %v256
    %273 = vmatpush.msra.mxu0 %v255
    %274 = vmatpush.msra.mxu0 %v254
    %275 = vmatpush.msra.mxu0 %v253
    %276 = vmatpush.msra.mxu0 %v252
    %277 = vmatpush.msra.mxu0 %v251
    %278 = vmatpush.msra.mxu0 %v250
    %279 = vmatpush.msra.mxu0 %v249
    %280 = vmatpush.msra.mxu0 %v248
    %281 = vmatpush.msra.mxu0 %v247
    %282 = vmatpush.msra.mxu0 %v246
    %283 = vmatmul.f32.gmra.mxu0 %v203
    %v284 = vpop.f32.mrf.mxu0
    %v285 = vadd.f32 %v265, %v284
    %286 = vdwg.mxu0
    %v287 = vmax.f32 %v285, 0.0
    %v288 = vld [vmem:[#allocation8] sm:$0xff]
    %v289 = vld [vmem:[#allocation8 + $0x8] sm:$0xff]
    %v290 = vld [vmem:[#allocation8 + $0x10] sm:$0xff]
    %v291 = vld [vmem:[#allocation8 + $0x18] sm:$0xff]
    %v292 = vld [vmem:[#allocation8 + $0x20] sm:$0xff]
    %v293 = vld [vmem:[#allocation8 + $0x28] sm:$0xff]
    %v294 = vld [vmem:[#allocation8 + $0x30] sm:$0xff]
    %v295 = vld [vmem:[#allocation8 + $0x38] sm:$0xff]
    %v296 = vld [vmem:[#allocation8 + $0x40] sm:$0xff]
    %v297 = vld [vmem:[#allocation8 + $0x48] sm:$0xff]
    %v298 = vld [vmem:[#allocation8 + $0x50] sm:$0xff]
    %v299 = vld [vmem:[#allocation8 + $0x58] sm:$0xff]
    %v300 = vld [vmem:[#allocation8 + $0x60] sm:$0xff]
    %v301 = vld [vmem:[#allocation8 + $0x68] sm:$0xff]
    %v302 = vld [vmem:[#allocation8 + $0x70] sm:$0xff]
    %v303 = vld [vmem:[#allocation8 + $0x78] sm:$0xff]
    %s304 = scalar_lea.vmem [#allocation8], 128
    %v305 = vld [vmem:[%s304] sm:$0xff]
    %v306 = vld [vmem:[%s304 + $0x8] sm:$0xff]
    %v307 = vld [vmem:[%s304 + $0x10] sm:$0xff]
    %v308 = vld [vmem:[%s304 + $0x18] sm:$0xff]
    %v309 = vld [vmem:[%s304 + $0x20] sm:$0xff]
    %v310 = vld [vmem:[%s304 + $0x28] sm:$0xff]
    %v311 = vld [vmem:[%s304 + $0x30] sm:$0xff]
    %v312 = vld [vmem:[%s304 + $0x38] sm:$0xff]
    %v313 = vld [vmem:[%s304 + $0x40] sm:$0xff]
    %v314 = vld [vmem:[%s304 + $0x48] sm:$0xff]
    %v315 = vld [vmem:[%s304 + $0x50] sm:$0xff]
    %v316 = vld [vmem:[%s304 + $0x58] sm:$0xff]
    %v317 = vld [vmem:[%s304 + $0x60] sm:$0xff]
    %v318 = vld [vmem:[%s304 + $0x68] sm:$0xff]
    %v319 = vld [vmem:[%s304 + $0x70] sm:$0xff]
    %v320 = vld [vmem:[%s304 + $0x78] sm:$0xff]
    %321 = vmatpush.msra.mxu0 %v320
    %322 = vmatpush.msra.mxu0 %v319
    %323 = vmatpush.msra.mxu0 %v318
    %324 = vmatpush.msra.mxu0 %v317
    %325 = vmatpush.msra.mxu0 %v316
    %326 = vmatpush.msra.mxu0 %v315
    %327 = vmatpush.msra.mxu0 %v314
    %328 = vmatpush.msra.mxu0 %v313
    %329 = vmatpush.msra.mxu0 %v312
    %330 = vmatpush.msra.mxu0 %v311
    %331 = vmatpush.msra.mxu0 %v310
    %332 = vmatpush.msra.mxu0 %v309
    %333 = vmatpush.msra.mxu0 %v308
    %334 = vmatpush.msra.mxu0 %v307
    %335 = vmatpush.msra.mxu0 %v306
    %336 = vmatpush.msra.mxu0 %v305
    %337 = vmatmul.f32.gmra.mxu0 %v287
    %v338 = vpop.f32.mrf.mxu0
    %v339 = vadd.f32 0.0, %v338
    %340 = vdwg.mxu0
    %341 = vmatpush.msra.mxu0 %v303
    %342 = vmatpush.msra.mxu0 %v302
    %343 = vmatpush.msra.mxu0 %v301
    %344 = vmatpush.msra.mxu0 %v300
    %345 = vmatpush.msra.mxu0 %v299
    %346 = vmatpush.msra.mxu0 %v298
    %347 = vmatpush.msra.mxu0 %v297
    %348 = vmatpush.msra.mxu0 %v296
    %349 = vmatpush.msra.mxu0 %v295
    %350 = vmatpush.msra.mxu0 %v294
    %351 = vmatpush.msra.mxu0 %v293
    %352 = vmatpush.msra.mxu0 %v292
    %353 = vmatpush.msra.mxu0 %v291
    %354 = vmatpush.msra.mxu0 %v290
    %355 = vmatpush.msra.mxu0 %v289
    %356 = vmatpush.msra.mxu0 %v288
    %357 = vmatmul.f32.gmra.mxu0 %v244
    %v358 = vpop.f32.mrf.mxu0
    %v359 = vadd.f32 %v339, %v358
    %360 = vdwg.mxu0
    %v361 = vld [vmem:[%s8] sm:$0x1]
    %v363 = vperm.slane %v361, 0
    %v365 = vadd.f32 %v359, %v363
    %366 = vst [vmem:[#allocation10] sm:$0xff] %v365
    // Predicated region
    $region54: #{tpu_custom_call.1} parent=1 // pred_check
      _
    $region55: #{tpu_custom_call.1} parent=1 // pred_check_branch
      %368 = sbr.rel (0) target = $region57
    $region56: #{tpu_custom_call.1} parent=1 // pred_region
      %370 = vsyncadd [#allocation4], 0
      %s372 = sshll.u32 [#allocation10], 4
      %s373 = int_to_ptr.vmem [resolvable:$true] %s372
      %s374 = sshll.u32 %s9, 4
      %s375 = int_to_ptr.hbm [resolvable:$true] %s374
      %377 = dma.vmem_to_hbm [thread:$0]  %s373, 128, %s375, [#allocation4]
    $region57: #{tpu_custom_call.1} parent=1 // pred_fallthru
      _
    // Predicated region
    $region58: #{tpu_custom_call.1} parent=1 // pred_check
      _
    $region59: #{tpu_custom_call.1} parent=1 // pred_check_branch
      %379 = sbr.rel (0) target = $region61
    $region60: #{tpu_custom_call.1} parent=1 // pred_region
      %381 = dma.done [#allocation4], 128
    $region61: #{tpu_custom_call.1} parent=1 // pred_fallthru
      _
    %382 = vsyncpa [#allocation3], 1
    %383 = vsyncpa [#allocation6], 1
    %384 = vsyncpa [#allocation9], 1
    %385 = vsyncpa [#allocation4], 1

</llo_original>
